<compile_context>
chip_gen: v5e
topology: v5e:2x2
jax: 0.10.0
libtpu: 0.0.40
codegen_flags: <defaults>
</compile_context>

<pallas_src>
import functools

import jax
import jax.numpy as jnp
from jax.experimental import pallas as pl
from jax.experimental.pallas import tpu as pltpu

IN_DIM = 3
IN_PAD = 4         # first-layer K, zero padded (block dim == full dim -> legal)
HIDDEN_DIM = 64
OUT_DIM = 1
DEPTH = 4          # 1 input linear + (DEPTH-1) hidden linears + 1 output linear


# --------------------------------------------------------------------------
# Kernel
# --------------------------------------------------------------------------
def fcnn_kernel(x_ref,
                w0_ref, b0_ref,
                w1_ref, b1_ref,
                w2_ref, b2_ref,
                w3_ref, b3_ref,
                w4_ref, b4_ref,
                o_ref, *, tanh_dtype):
    """Feature-major MLP forward on one batch tile.

    x_ref : (IN_PAD, tile_m)   batch on lanes (lane-dense)
    wK    : (fan_out, fan_in)  PyTorch layout -> layer is W @ h + b
    bK    : (fan_out, 1)       f32, broadcast over lanes
    o_ref : (OUT_DIM, tile_m)  lane-dense f32 output slab
    tanh_dtype : dtype the tanh runs in (bf16 on v6e/v7x bf16 path, else f32)
    """
    cdt = w0_ref.dtype  # MXU operand dtype (f32 or bf16); accumulation is f32

    h = x_ref[...].astype(cdt)
    for w_ref, b_ref in ((w0_ref, b0_ref), (w1_ref, b1_ref),
                         (w2_ref, b2_ref), (w3_ref, b3_ref)):
        acc = jnp.dot(w_ref[...], h,
                      preferred_element_type=jnp.float32) + b_ref[...]
        h = jnp.tanh(acc.astype(tanh_dtype)).astype(cdt)

    # Final layer: keep accumulate + bias + store in f32.
    o_ref[...] = (jnp.dot(w4_ref[...], h,
                          preferred_element_type=jnp.float32)
                  + b4_ref[...]).astype(o_ref.dtype)


# --------------------------------------------------------------------------
# Wrapper helpers
# --------------------------------------------------------------------------
def _choose_tile_m(n, *, max_tile_m=4096, target_grid=4):
    """Pick a lane-aligned batch tile: ~target_grid grid steps (v7x megacore),
    capped at max_tile_m (VMEM-safe across v5e/v6e/v7x)."""
    tile = -(-n // target_grid)          # ceil(n / target_grid)
    tile = -(-tile // 128) * 128         # round up to lane multiple
    return max(128, min(max_tile_m, tile))


def _default_tanh_dtype(operand_dtype):
    """bf16 tanh only where the vector/EUP path supports bf16 (v6e/v7x)."""
    if jnp.dtype(operand_dtype) == jnp.dtype(jnp.float32):
        return jnp.float32
    kind = jax.devices()[0].device_kind.lower()
    if "v5 lite" in kind or "v5e" in kind or "v5lite" in kind:
        return jnp.float32
    return jnp.bfloat16


def _prep_params(params, operand_dtype):
    """Flatten params to [w0,b0,...]; pad W0 fan_in 3->IN_PAD; cast W to
    operand dtype, keep biases f32 as (fan_out, 1)."""
    flat = []
    for li, (w, b) in enumerate(params):
        if li == 0:
            w = jnp.pad(w, ((0, 0), (0, IN_PAD - IN_DIM)))
        flat.append(w.astype(operand_dtype))
        flat.append(b.reshape(-1, 1).astype(jnp.float32))
    return tuple(flat)


def _fcnn_pallas(xT, flat_params, *, tile_m, tanh_dtype):
    """xT: (IN_PAD, n_pad) lane-dense; returns (OUT_DIM, n_pad) f32."""
    in_pad, n_pad = xT.shape
    assert n_pad % tile_m == 0

    param_specs = [pl.BlockSpec(p.shape, lambda i: (0, 0)) for p in flat_params]

    grid_spec = pltpu.PrefetchScalarGridSpec(
        num_scalar_prefetch=0,
        grid=(n_pad // tile_m,),
        in_specs=[pl.BlockSpec((in_pad, tile_m), lambda i: (0, i))] + param_specs,
        out_specs=pl.BlockSpec((OUT_DIM, tile_m), lambda i: (0, i)),
    )

    return pl.pallas_call(
        functools.partial(fcnn_kernel, tanh_dtype=tanh_dtype),
        out_shape=jax.ShapeDtypeStruct((OUT_DIM, n_pad), jnp.float32),
        grid_spec=grid_spec,
        compiler_params=pltpu.CompilerParams(
            dimension_semantics=("parallel",),
            vmem_limit_bytes=32 * 1024 * 1024),
    )(xT, *flat_params)


# --------------------------------------------------------------------------
# Public entry points
# --------------------------------------------------------------------------
@functools.partial(jax.jit,
                   static_argnames=("tile_m", "operand_dtype", "tanh_dtype"))
def _fcnn_forward_jit(x, params, *, tile_m, operand_dtype, tanh_dtype):
    n = x.shape[0]
    n_pad = pl.cdiv(n, tile_m) * tile_m
    # pad + transpose + cast fused by XLA with the pallas_call (single copy).
    x_p = jnp.pad(x, ((0, n_pad - n), (0, IN_PAD - IN_DIM)))
    xT = x_p.T.astype(operand_dtype)                       # (IN_PAD, n_pad)
    flat = _prep_params(params, operand_dtype)
    out_t = _fcnn_pallas(xT, flat, tile_m=tile_m, tanh_dtype=tanh_dtype)
    return out_t.T[:n]                                     # (n, OUT_DIM) f32


def fcnn_forward(x, params, *, max_tile_m=4096, operand_dtype=jnp.float32,
                 tanh_dtype=None):
    """x: (N, IN_DIM) f32. params: [(W, b)] with W:(fan_out, fan_in), b:(fan_out,).
    Returns (N, OUT_DIM) f32, matching the PyTorch module's forward."""
    assert x.shape[1] == IN_DIM
    tile_m = _choose_tile_m(x.shape[0], max_tile_m=max_tile_m)
    if tanh_dtype is None:
        tanh_dtype = _default_tanh_dtype(operand_dtype)
    return _fcnn_forward_jit(x, params, tile_m=tile_m,
                             operand_dtype=operand_dtype, tanh_dtype=tanh_dtype)


@functools.partial(jax.jit, static_argnames=("tile_m", "tanh_dtype"))
def fcnn_forward_feature_major(xT, params, *, tile_m, tanh_dtype=jnp.float32):
    """Zero-copy entry for callers that already have feature-major data.
    xT: (IN_PAD, N) lane-dense (features 0..2 real, row 3 zero).
    Returns (OUT_DIM, N) f32."""
    n = xT.shape[1]
    n_pad = pl.cdiv(n, tile_m) * tile_m
    xT_p = jnp.pad(xT, ((0, 0), (0, n_pad - n)))
    flat = _prep_params(params, xT.dtype)
    return _fcnn_pallas(xT_p, flat, tile_m=tile_m, tanh_dtype=tanh_dtype)[:, :n]


# --------------------------------------------------------------------------
# Init + reference
# --------------------------------------------------------------------------
def init_params(key):
    """PyTorch-layout init: W (fan_out, fan_in), b (fan_out,), U(+-1/sqrt(fan_in))."""
    dims = [(IN_DIM, HIDDEN_DIM)]
    dims += [(HIDDEN_DIM, HIDDEN_DIM)] * (DEPTH - 1)
    dims += [(HIDDEN_DIM, OUT_DIM)]

    params = []
    for fan_in, fan_out in dims:
        key, kw, kb = jax.random.split(key, 3)
        bound = 1.0 / (fan_in ** 0.5)
        w = jax.random.uniform(kw, (fan_out, fan_in), jnp.float32,
                               minval=-bound, maxval=bound)
        b = jax.random.uniform(kb, (fan_out,), jnp.float32,
                               minval=-bound, maxval=bound)
        params.append((w, b))
    return params


def fcnn_reference(x, params):
    h = x
    for i, (w, b) in enumerate(params):
        h = h @ w.T + b
        if i < len(params) - 1:
            h = jnp.tanh(h)
    return h


# --------------------------------------------------------------------------
# Demo / correctness check
# --------------------------------------------------------------------------
if __name__ == "__main__":
    key = jax.random.PRNGKey(0)
    key, kx1, kx2 = jax.random.split(key, 3)
    params = init_params(key)

    # Small case (N=256): tile_m=128 -> 2 'parallel' grid steps (both v7x TCs).
    x_small = jax.random.normal(kx1, (256, IN_DIM), jnp.float32)
    out_small = jax.block_until_ready(fcnn_forward(x_small, params))
    ref_small = fcnn_reference(x_small, params)
    assert out_small.shape == (256, OUT_DIM)
    assert jnp.allclose(out_small, ref_small, atol=1e-5, rtol=1e-5), \
        "f32 small-batch mismatch"

    # Non-multiple batch: exercises pad/slice and a multi-step grid.
    x_odd = jax.random.normal(kx2, (1024 + 19, IN_DIM), jnp.float32)
    out_odd = jax.block_until_ready(fcnn_forward(x_odd, params))
    ref_odd = fcnn_reference(x_odd, params)
    assert out_odd.shape == (1024 + 19, OUT_DIM)
    assert jnp.allclose(out_odd, ref_odd, atol=1e-5, rtol=1e-5), \
        "f32 odd-batch mismatch"

    # bf16 MXU operands (f32 accumulation; tanh dtype auto per generation).
    # Loose tolerance: x and W are bf16-quantized before layer 0.
    out_bf16 = jax.block_until_ready(
        fcnn_forward(x_odd, params, operand_dtype=jnp.bfloat16))
    assert jnp.allclose(out_bf16, ref_odd, atol=1e-1, rtol=1e-1), \
        "bf16 mismatch"

    # Feature-major entry (no wrapper transpose at all).
    xT_small = jnp.pad(x_small, ((0, 0), (0, IN_PAD - IN_DIM))).T   # (4, 256)
    out_fm = jax.block_until_ready(
        fcnn_forward_feature_major(xT_small, params, tile_m=128))
    assert jnp.allclose(out_fm.T, ref_small, atol=1e-5, rtol=1e-5), \
        "feature-major mismatch"

    print("KERNEL_OK")
</pallas_src>

<mosaic_0001>
module attributes {stable_mosaic.version = 11 : i64} {
  func.func @fcnn_kernel(%arg0: i32, %arg1: memref<4x128xf32, #tpu.memory_space<vmem>>, %arg2: memref<64x4xf32, #tpu.memory_space<vmem>>, %arg3: memref<64x1xf32, #tpu.memory_space<vmem>>, %arg4: memref<64x64xf32, #tpu.memory_space<vmem>>, %arg5: memref<64x1xf32, #tpu.memory_space<vmem>>, %arg6: memref<64x64xf32, #tpu.memory_space<vmem>>, %arg7: memref<64x1xf32, #tpu.memory_space<vmem>>, %arg8: memref<64x64xf32, #tpu.memory_space<vmem>>, %arg9: memref<64x1xf32, #tpu.memory_space<vmem>>, %arg10: memref<1x64xf32, #tpu.memory_space<vmem>>, %arg11: memref<1x1xf32, #tpu.memory_space<vmem>>, %arg12: memref<1x128xf32, #tpu.memory_space<vmem>>) attributes {dimension_semantics = [#tpu.dimension_semantics<parallel>], iteration_bounds = array<i64: 2>, scalar_prefetch = 0 : i64, scratch_operands = 0 : i64, tpu.core_type = #tpu.core_type<tc>, window_params = [{transform_indices = @transform_0, window_bounds = array<i64: 4, 128>}, {pipeline_mode = #tpu.pipeline_mode<synchronous>, transform_indices = @transform_1, window_bounds = array<i64: 64, 4>}, {pipeline_mode = #tpu.pipeline_mode<synchronous>, transform_indices = @transform_2, window_bounds = array<i64: 64, 1>}, {pipeline_mode = #tpu.pipeline_mode<synchronous>, transform_indices = @transform_3, window_bounds = array<i64: 64, 64>}, {pipeline_mode = #tpu.pipeline_mode<synchronous>, transform_indices = @transform_4, window_bounds = array<i64: 64, 1>}, {pipeline_mode = #tpu.pipeline_mode<synchronous>, transform_indices = @transform_5, window_bounds = array<i64: 64, 64>}, {pipeline_mode = #tpu.pipeline_mode<synchronous>, transform_indices = @transform_6, window_bounds = array<i64: 64, 1>}, {pipeline_mode = #tpu.pipeline_mode<synchronous>, transform_indices = @transform_7, window_bounds = array<i64: 64, 64>}, {pipeline_mode = #tpu.pipeline_mode<synchronous>, transform_indices = @transform_8, window_bounds = array<i64: 64, 1>}, {pipeline_mode = #tpu.pipeline_mode<synchronous>, transform_indices = @transform_9, window_bounds = array<i64: 1, 64>}, {pipeline_mode = #tpu.pipeline_mode<synchronous>, transform_indices = @transform_10, window_bounds = array<i64: 1, 1>}, {transform_indices = @transform_11, window_bounds = array<i64: 1, 128>}]} {
    %c0 = arith.constant 0 : index
    %c0_0 = arith.constant 0 : index
    %0 = vector.load %arg1[%c0, %c0_0] : memref<4x128xf32, #tpu.memory_space<vmem>>, vector<4x128xf32>
    %c0_1 = arith.constant 0 : index
    %c0_2 = arith.constant 0 : index
    %1 = vector.load %arg2[%c0_1, %c0_2] : memref<64x4xf32, #tpu.memory_space<vmem>>, vector<64x4xf32>
    %cst = arith.constant dense<0.000000e+00> : vector<64x128xf32>
    %2 = tpu.matmul %1, %0, %cst {dimension_numbers = #tpu.dot_dimension_numbers<[1], [0], [0], [1], [0, 0, 1, 1], [], []>} : vector<64x4xf32>, vector<4x128xf32>, vector<64x128xf32> -> vector<64x128xf32>
    %c0_3 = arith.constant 0 : index
    %c0_4 = arith.constant 0 : index
    %3 = vector.load %arg3[%c0_3, %c0_4] : memref<64x1xf32, #tpu.memory_space<vmem>>, vector<64x1xf32>
    %4 = vector.broadcast %3 : vector<64x1xf32> to vector<64x128xf32>
    %5 = arith.addf %2, %4 : vector<64x128xf32>
    %6 = math.tanh %5 : vector<64x128xf32>
    %c0_5 = arith.constant 0 : index
    %c0_6 = arith.constant 0 : index
    %7 = vector.load %arg4[%c0_5, %c0_6] : memref<64x64xf32, #tpu.memory_space<vmem>>, vector<64x64xf32>
    %cst_7 = arith.constant dense<0.000000e+00> : vector<64x128xf32>
    %8 = tpu.matmul %7, %6, %cst_7 {dimension_numbers = #tpu.dot_dimension_numbers<[1], [0], [0], [1], [0, 0, 1, 1], [], []>} : vector<64x64xf32>, vector<64x128xf32>, vector<64x128xf32> -> vector<64x128xf32>
    %c0_8 = arith.constant 0 : index
    %c0_9 = arith.constant 0 : index
    %9 = vector.load %arg5[%c0_8, %c0_9] : memref<64x1xf32, #tpu.memory_space<vmem>>, vector<64x1xf32>
    %10 = vector.broadcast %9 : vector<64x1xf32> to vector<64x128xf32>
    %11 = arith.addf %8, %10 : vector<64x128xf32>
    %12 = math.tanh %11 : vector<64x128xf32>
    %c0_10 = arith.constant 0 : index
    %c0_11 = arith.constant 0 : index
    %13 = vector.load %arg6[%c0_10, %c0_11] : memref<64x64xf32, #tpu.memory_space<vmem>>, vector<64x64xf32>
    %cst_12 = arith.constant dense<0.000000e+00> : vector<64x128xf32>
    %14 = tpu.matmul %13, %12, %cst_12 {dimension_numbers = #tpu.dot_dimension_numbers<[1], [0], [0], [1], [0, 0, 1, 1], [], []>} : vector<64x64xf32>, vector<64x128xf32>, vector<64x128xf32> -> vector<64x128xf32>
    %c0_13 = arith.constant 0 : index
    %c0_14 = arith.constant 0 : index
    %15 = vector.load %arg7[%c0_13, %c0_14] : memref<64x1xf32, #tpu.memory_space<vmem>>, vector<64x1xf32>
    %16 = vector.broadcast %15 : vector<64x1xf32> to vector<64x128xf32>
    %17 = arith.addf %14, %16 : vector<64x128xf32>
    %18 = math.tanh %17 : vector<64x128xf32>
    %c0_15 = arith.constant 0 : index
    %c0_16 = arith.constant 0 : index
    %19 = vector.load %arg8[%c0_15, %c0_16] : memref<64x64xf32, #tpu.memory_space<vmem>>, vector<64x64xf32>
    %cst_17 = arith.constant dense<0.000000e+00> : vector<64x128xf32>
    %20 = tpu.matmul %19, %18, %cst_17 {dimension_numbers = #tpu.dot_dimension_numbers<[1], [0], [0], [1], [0, 0, 1, 1], [], []>} : vector<64x64xf32>, vector<64x128xf32>, vector<64x128xf32> -> vector<64x128xf32>
    %c0_18 = arith.constant 0 : index
    %c0_19 = arith.constant 0 : index
    %21 = vector.load %arg9[%c0_18, %c0_19] : memref<64x1xf32, #tpu.memory_space<vmem>>, vector<64x1xf32>
    %22 = vector.broadcast %21 : vector<64x1xf32> to vector<64x128xf32>
    %23 = arith.addf %20, %22 : vector<64x128xf32>
    %24 = math.tanh %23 : vector<64x128xf32>
    %c0_20 = arith.constant 0 : index
    %c0_21 = arith.constant 0 : index
    %25 = vector.load %arg10[%c0_20, %c0_21] : memref<1x64xf32, #tpu.memory_space<vmem>>, vector<1x64xf32>
    %cst_22 = arith.constant dense<0.000000e+00> : vector<1x128xf32>
    %26 = tpu.matmul %25, %24, %cst_22 {dimension_numbers = #tpu.dot_dimension_numbers<[1], [0], [0], [1], [0, 0, 1, 1], [], []>} : vector<1x64xf32>, vector<64x128xf32>, vector<1x128xf32> -> vector<1x128xf32>
    %c0_23 = arith.constant 0 : index
    %c0_24 = arith.constant 0 : index
    %27 = vector.load %arg11[%c0_23, %c0_24] : memref<1x1xf32, #tpu.memory_space<vmem>>, vector<1x1xf32>
    %28 = vector.broadcast %27 : vector<1x1xf32> to vector<1x128xf32>
    %29 = arith.addf %26, %28 : vector<1x128xf32>
    %c0_25 = arith.constant 0 : index
    %c0_26 = arith.constant 0 : index
    %30 = vector.load %arg12[%c0_25, %c0_26] : memref<1x128xf32, #tpu.memory_space<vmem>>, vector<1x128xf32>
    tpu.vector_store %arg12[%c0_25, %c0_26], %29 {strides = array<i32>} : memref<1x128xf32, #tpu.memory_space<vmem>>, vector<1x128xf32>,
    return
  }
  func.func @transform_0(%arg0: i32) -> (i32, i32) {
    %c0_i32 = arith.constant 0 : i32
    %c0_i32_0 = arith.constant 0 : i32
    return %c0_i32, %arg0 : i32, i32
  }
  func.func @transform_1(%arg0: i32) -> (i32, i32) {
    %c0_i32 = arith.constant 0 : i32
    %c0_i32_0 = arith.constant 0 : i32
    %c0_i32_1 = arith.constant 0 : i32
    return %c0_i32, %c0_i32_0 : i32, i32
  }
  func.func @transform_2(%arg0: i32) -> (i32, i32) {
    %c0_i32 = arith.constant 0 : i32
    %c0_i32_0 = arith.constant 0 : i32
    %c0_i32_1 = arith.constant 0 : i32
    return %c0_i32, %c0_i32_0 : i32, i32
  }
  func.func @transform_3(%arg0: i32) -> (i32, i32) {
    %c0_i32 = arith.constant 0 : i32
    %c0_i32_0 = arith.constant 0 : i32
    %c0_i32_1 = arith.constant 0 : i32
    return %c0_i32, %c0_i32_0 : i32, i32
  }
  func.func @transform_4(%arg0: i32) -> (i32, i32) {
    %c0_i32 = arith.constant 0 : i32
    %c0_i32_0 = arith.constant 0 : i32
    %c0_i32_1 = arith.constant 0 : i32
    return %c0_i32, %c0_i32_0 : i32, i32
  }
  func.func @transform_5(%arg0: i32) -> (i32, i32) {
    %c0_i32 = arith.constant 0 : i32
    %c0_i32_0 = arith.constant 0 : i32
    %c0_i32_1 = arith.constant 0 : i32
    return %c0_i32, %c0_i32_0 : i32, i32
  }
  func.func @transform_6(%arg0: i32) -> (i32, i32) {
    %c0_i32 = arith.constant 0 : i32
    %c0_i32_0 = arith.constant 0 : i32
    %c0_i32_1 = arith.constant 0 : i32
    return %c0_i32, %c0_i32_0 : i32, i32
  }
  func.func @transform_7(%arg0: i32) -> (i32, i32) {
    %c0_i32 = arith.constant 0 : i32
    %c0_i32_0 = arith.constant 0 : i32
    %c0_i32_1 = arith.constant 0 : i32
    return %c0_i32, %c0_i32_0 : i32, i32
  }
  func.func @transform_8(%arg0: i32) -> (i32, i32) {
    %c0_i32 = arith.constant 0 : i32
    %c0_i32_0 = arith.constant 0 : i32
    %c0_i32_1 = arith.constant 0 : i32
    return %c0_i32, %c0_i32_0 : i32, i32
  }
  func.func @transform_9(%arg0: i32) -> (i32, i32) {
    %c0_i32 = arith.constant 0 : i32
    %c0_i32_0 = arith.constant 0 : i32
    %c0_i32_1 = arith.constant 0 : i32
    return %c0_i32, %c0_i32_0 : i32, i32
  }
  func.func @transform_10(%arg0: i32) -> (i32, i32) {
    %c0_i32 = arith.constant 0 : i32
    %c0_i32_0 = arith.constant 0 : i32
    %c0_i32_1 = arith.constant 0 : i32
    return %c0_i32, %c0_i32_0 : i32, i32
  }
  func.func @transform_11(%arg0: i32) -> (i32, i32) {
    %c0_i32 = arith.constant 0 : i32
    %c0_i32_0 = arith.constant 0 : i32
    return %c0_i32, %arg0 : i32, i32
  }
}

</mosaic_0001>

<llo_original>
// kernel: _fcnn_forward_jit.1
$region0: #{_fcnn_forward_jit.1}
  #allocation0 [shape = 'u32[]', space=smem, size = 0x4, offset = 0x4, fixed_abs, tag = 'smem constant byte address 0x4 - core index']
  #allocation1 [shape = 'u32[72,128]{1,0:T(1,128)}', space=vmem, size = 0x9000, scoped, tag = 'internal scratch']
  #allocation2 [shape = 'f32[1,1]{1,0:T(1,128)S(1)}', space=vmem, size = 0x200, scoped, tag = 'scoped memory for _fcnn_forward_jit.1']
  %s0 = inlined_call_operand.vmem [shape: f32[4,256], index: 0, kind: input, shape index: {}]
  %s1 = inlined_call_operand.vmem [shape: f32[64,4], index: 1, kind: input, shape index: {}]
  %s2 = inlined_call_operand.vmem [shape: f32[64,1], index: 2, kind: input, shape index: {}]
  %s3 = inlined_call_operand.vmem [shape: f32[64,64], index: 3, kind: input, shape index: {}]
  %s4 = inlined_call_operand.vmem [shape: f32[64,1], index: 4, kind: input, shape index: {}]
  %s5 = inlined_call_operand.vmem [shape: f32[64,64], index: 5, kind: input, shape index: {}]
  %s6 = inlined_call_operand.vmem [shape: f32[64,1], index: 6, kind: input, shape index: {}]
  %s7 = inlined_call_operand.vmem [shape: f32[64,64], index: 7, kind: input, shape index: {}]
  %s8 = inlined_call_operand.vmem [shape: f32[64,1], index: 8, kind: input, shape index: {}]
  %s9 = inlined_call_operand.vmem [shape: f32[1,64], index: 9, kind: input, shape index: {}]
  %s10 = inlined_call_operand.<no memory space> [shape: f32[1,1], index: 10, kind: input, shape index: {}]
  %s11 = inlined_call_operand.hbm [shape: f32[1,256], index: 11, kind: output, shape index: {}]
  %s12 = sld [smem:[#allocation0]]
  $region77: #{_fcnn_forward_jit.1} parent=0
    _
  %s14 = ssub.s32 1, %s12
  %s15 = scalar_select 0, %s14, %s12
  %v16 = vstv %s10
  %17 = vst [vmem:[#allocation2] sm:$0x1] %v16
  $region1: #{_fcnn_forward_jit.1} parent=0
    #allocation3 [shape = 'u8[1024]{0}', space=vmem, size = 0x400, scoped, tag = 'output window, operand 0']
    #allocation4 [shape = 's32[2]{0}', space=sflag, size = 0x8, scoped, tag = 'scoped memory for _fcnn_forward_jit.1']
    %18 = vsyncpa [#allocation4], 0
    %s19 = scalar_lea.sflag [#allocation4], 1
    %20 = vsyncpa %s19, 0
    loop: start=0, step=1, limit=4
    $region2: #{_fcnn_forward_jit.1} parent=1 // loop_pre_header
      _
    $region3: #{_fcnn_forward_jit.1} parent=1 // loop_header
      %s22 = sphi 0, %s26
      %p23 = scmp.ge.s32.totalorder %s22, 4
      %s32 = sphi 0, %s34
      %s35 = sphi 0, %s32
      %s36 = sphi 0, %s35
      %s52 = sphi 0, %s36
      %s56 = sphi 0, %s56
      %s58 = sphi 0, %s56
      %s59 = sphi 0, %s58
      %s73 = sphi 0, %s59
      %s77 = sphi 0, %s77
      %s79 = sphi 0, %s77
      %s80 = sphi 0, %s79
      %s94 = sphi 0, %s80
      %s98 = sphi 0, %s98
      %s100 = sphi 0, %s98
      %s101 = sphi 0, %s100
      %s115 = sphi 0, %s101
      %s119 = sphi 0, %s119
      %s121 = sphi 0, %s119
      %s122 = sphi 0, %s121
      %s136 = sphi 0, %s122
      %s140 = sphi 0, %s140
      %s142 = sphi 0, %s140
      %s143 = sphi 0, %s142
      %s157 = sphi 0, %s143
      %s161 = sphi 0, %s161
      %s163 = sphi 0, %s161
      %s164 = sphi 0, %s163
      %s178 = sphi 0, %s164
      %s182 = sphi 0, %s182
      %s184 = sphi 0, %s182
      %s185 = sphi 0, %s184
      %s199 = sphi 0, %s185
      %s203 = sphi 0, %s203
      %s205 = sphi 0, %s203
      %s206 = sphi 0, %s205
      %s220 = sphi 0, %s206
      %s224 = sphi 0, %s224
      %s226 = sphi 0, %s224
      %s227 = sphi 0, %s226
      %s241 = sphi 0, %s227
      %s245 = sphi 0, %s245
      %s247 = sphi 0, %s245
      %s248 = sphi 0, %s247
      %s262 = sphi 0, %s248
      %s268 = sphi 0, %s270
      %s271 = sphi 0, %s268
      %s272 = sphi 0, %s271
      %s288 = sphi 0, %s272
    $region4: #{_fcnn_forward_jit.1} parent=1 // loop_header_branch
      %25 = sbr.rel (%p23) target = $region8
    $region5: #{_fcnn_forward_jit.1} parent=1 // loop_body
      %s27 = ssub.s32 %s22, 1
      %s28 = ssub.s32 %s22, 2
      %s29 = sadd.s32 %s22, 1
      %s30 = ssub.s32 %s22, %s29
      %p31 = scmp.eq.s32.totalorder %s30, 0
      %s33 = sadd.s32 %s32, 1
      %s34 = scalar_select %p31, %s32, %s33
      %p37 = pneg %p31
      %p38 = scmp.eq.s32.totalorder %s22, 1
      %p39 = por %p37, %p38
      %p40 = scmp.ne.s32.totalorder %s32, %s35
      %p41 = scmp.eq.s32.totalorder %s22, 0
      %p42 = por %p40, %p41
      %p43 = scmp.ne.s32.totalorder %s32, %s35
      %p44 = scmp.eq.s32.totalorder %s27, 1
      %p45 = por %p43, %p44
      %p46 = scmp.ne.s32.totalorder %s35, %s36
      %p47 = scmp.eq.s32.totalorder %s27, 0
      %p48 = por %p46, %p47
      %p49 = scmp.ne.s32.totalorder %s35, %s36
      %p50 = scmp.eq.s32.totalorder %s28, 1
      %p51 = por %p49, %p50
      %p53 = scmp.ne.s32.totalorder %s36, %s52
      %p54 = scmp.eq.s32.totalorder %s28, 0
      %p55 = por %p53, %p54
      %s57 = sadd.s32 %s56, 1
      %p60 = scmp.eq.s32.totalorder %s22, 1
      %p61 = scmp.ne.s32.totalorder %s56, %s58
      %p62 = scmp.eq.s32.totalorder %s22, 0
      %p63 = por %p61, %p62
      %p64 = scmp.ne.s32.totalorder %s56, %s58
      %p65 = scmp.eq.s32.totalorder %s27, 1
      %p66 = por %p64, %p65
      %p67 = scmp.ne.s32.totalorder %s58, %s59
      %p68 = scmp.eq.s32.totalorder %s27, 0
      %p69 = por %p67, %p68
      %p70 = scmp.ne.s32.totalorder %s58, %s59
      %p71 = scmp.eq.s32.totalorder %s28, 1
      %p72 = por %p70, %p71
      %p74 = scmp.ne.s32.totalorder %s59, %s73
      %p75 = scmp.eq.s32.totalorder %s28, 0
      %p76 = por %p74, %p75
      %s78 = sadd.s32 %s77, 1
      %p81 = scmp.eq.s32.totalorder %s22, 1
      %p82 = scmp.ne.s32.totalorder %s77, %s79
      %p83 = scmp.eq.s32.totalorder %s22, 0
      %p84 = por %p82, %p83
      %p85 = scmp.ne.s32.totalorder %s77, %s79
      %p86 = scmp.eq.s32.totalorder %s27, 1
      %p87 = por %p85, %p86
      %p88 = scmp.ne.s32.totalorder %s79, %s80
      %p89 = scmp.eq.s32.totalorder %s27, 0
      %p90 = por %p88, %p89
      %p91 = scmp.ne.s32.totalorder %s79, %s80
      %p92 = scmp.eq.s32.totalorder %s28, 1
      %p93 = por %p91, %p92
      %p95 = scmp.ne.s32.totalorder %s80, %s94
      %p96 = scmp.eq.s32.totalorder %s28, 0
      %p97 = por %p95, %p96
      %s99 = sadd.s32 %s98, 1
      %p102 = scmp.eq.s32.totalorder %s22, 1
      %p103 = scmp.ne.s32.totalorder %s98, %s100
      %p104 = scmp.eq.s32.totalorder %s22, 0
      %p105 = por %p103, %p104
      %p106 = scmp.ne.s32.totalorder %s98, %s100
      %p107 = scmp.eq.s32.totalorder %s27, 1
      %p108 = por %p106, %p107
      %p109 = scmp.ne.s32.totalorder %s100, %s101
      %p110 = scmp.eq.s32.totalorder %s27, 0
      %p111 = por %p109, %p110
      %p112 = scmp.ne.s32.totalorder %s100, %s101
      %p113 = scmp.eq.s32.totalorder %s28, 1
      %p114 = por %p112, %p113
      %p116 = scmp.ne.s32.totalorder %s101, %s115
      %p117 = scmp.eq.s32.totalorder %s28, 0
      %p118 = por %p116, %p117
      %s120 = sadd.s32 %s119, 1
      %p123 = scmp.eq.s32.totalorder %s22, 1
      %p124 = scmp.ne.s32.totalorder %s119, %s121
      %p125 = scmp.eq.s32.totalorder %s22, 0
      %p126 = por %p124, %p125
      %p127 = scmp.ne.s32.totalorder %s119, %s121
      %p128 = scmp.eq.s32.totalorder %s27, 1
      %p129 = por %p127, %p128
      %p130 = scmp.ne.s32.totalorder %s121, %s122
      %p131 = scmp.eq.s32.totalorder %s27, 0
      %p132 = por %p130, %p131
      %p133 = scmp.ne.s32.totalorder %s121, %s122
      %p134 = scmp.eq.s32.totalorder %s28, 1
      %p135 = por %p133, %p134
      %p137 = scmp.ne.s32.totalorder %s122, %s136
      %p138 = scmp.eq.s32.totalorder %s28, 0
      %p139 = por %p137, %p138
      %s141 = sadd.s32 %s140, 1
      %p144 = scmp.eq.s32.totalorder %s22, 1
      %p145 = scmp.ne.s32.totalorder %s140, %s142
      %p146 = scmp.eq.s32.totalorder %s22, 0
      %p147 = por %p145, %p146
      %p148 = scmp.ne.s32.totalorder %s140, %s142
      %p149 = scmp.eq.s32.totalorder %s27, 1
      %p150 = por %p148, %p149
      %p151 = scmp.ne.s32.totalorder %s142, %s143
      %p152 = scmp.eq.s32.totalorder %s27, 0
      %p153 = por %p151, %p152
      %p154 = scmp.ne.s32.totalorder %s142, %s143
      %p155 = scmp.eq.s32.totalorder %s28, 1
      %p156 = por %p154, %p155
      %p158 = scmp.ne.s32.totalorder %s143, %s157
      %p159 = scmp.eq.s32.totalorder %s28, 0
      %p160 = por %p158, %p159
      %s162 = sadd.s32 %s161, 1
      %p165 = scmp.eq.s32.totalorder %s22, 1
      %p166 = scmp.ne.s32.totalorder %s161, %s163
      %p167 = scmp.eq.s32.totalorder %s22, 0
      %p168 = por %p166, %p167
      %p169 = scmp.ne.s32.totalorder %s161, %s163
      %p170 = scmp.eq.s32.totalorder %s27, 1
      %p171 = por %p169, %p170
      %p172 = scmp.ne.s32.totalorder %s163, %s164
      %p173 = scmp.eq.s32.totalorder %s27, 0
      %p174 = por %p172, %p173
      %p175 = scmp.ne.s32.totalorder %s163, %s164
      %p176 = scmp.eq.s32.totalorder %s28, 1
      %p177 = por %p175, %p176
      %p179 = scmp.ne.s32.totalorder %s164, %s178
      %p180 = scmp.eq.s32.totalorder %s28, 0
      %p181 = por %p179, %p180
      %s183 = sadd.s32 %s182, 1
      %p186 = scmp.eq.s32.totalorder %s22, 1
      %p187 = scmp.ne.s32.totalorder %s182, %s184
      %p188 = scmp.eq.s32.totalorder %s22, 0
      %p189 = por %p187, %p188
      %p190 = scmp.ne.s32.totalorder %s182, %s184
      %p191 = scmp.eq.s32.totalorder %s27, 1
      %p192 = por %p190, %p191
      %p193 = scmp.ne.s32.totalorder %s184, %s185
      %p194 = scmp.eq.s32.totalorder %s27, 0
      %p195 = por %p193, %p194
      %p196 = scmp.ne.s32.totalorder %s184, %s185
      %p197 = scmp.eq.s32.totalorder %s28, 1
      %p198 = por %p196, %p197
      %p200 = scmp.ne.s32.totalorder %s185, %s199
      %p201 = scmp.eq.s32.totalorder %s28, 0
      %p202 = por %p200, %p201
      %s204 = sadd.s32 %s203, 1
      %p207 = scmp.eq.s32.totalorder %s22, 1
      %p208 = scmp.ne.s32.totalorder %s203, %s205
      %p209 = scmp.eq.s32.totalorder %s22, 0
      %p210 = por %p208, %p209
      %p211 = scmp.ne.s32.totalorder %s203, %s205
      %p212 = scmp.eq.s32.totalorder %s27, 1
      %p213 = por %p211, %p212
      %p214 = scmp.ne.s32.totalorder %s205, %s206
      %p215 = scmp.eq.s32.totalorder %s27, 0
      %p216 = por %p214, %p215
      %p217 = scmp.ne.s32.totalorder %s205, %s206
      %p218 = scmp.eq.s32.totalorder %s28, 1
      %p219 = por %p217, %p218
      %p221 = scmp.ne.s32.totalorder %s206, %s220
      %p222 = scmp.eq.s32.totalorder %s28, 0
      %p223 = por %p221, %p222
      %s225 = sadd.s32 %s224, 1
      %p228 = scmp.eq.s32.totalorder %s22, 1
      %p229 = scmp.ne.s32.totalorder %s224, %s226
      %p230 = scmp.eq.s32.totalorder %s22, 0
      %p231 = por %p229, %p230
      %p232 = scmp.ne.s32.totalorder %s224, %s226
      %p233 = scmp.eq.s32.totalorder %s27, 1
      %p234 = por %p232, %p233
      %p235 = scmp.ne.s32.totalorder %s226, %s227
      %p236 = scmp.eq.s32.totalorder %s27, 0
      %p237 = por %p235, %p236
      %p238 = scmp.ne.s32.totalorder %s226, %s227
      %p239 = scmp.eq.s32.totalorder %s28, 1
      %p240 = por %p238, %p239
      %p242 = scmp.ne.s32.totalorder %s227, %s241
      %p243 = scmp.eq.s32.totalorder %s28, 0
      %p244 = por %p242, %p243
      %s246 = sadd.s32 %s245, 1
      %p249 = scmp.eq.s32.totalorder %s22, 1
      %p250 = scmp.ne.s32.totalorder %s245, %s247
      %p251 = scmp.eq.s32.totalorder %s22, 0
      %p252 = por %p250, %p251
      %p253 = scmp.ne.s32.totalorder %s245, %s247
      %p254 = scmp.eq.s32.totalorder %s27, 1
      %p255 = por %p253, %p254
      %p256 = scmp.ne.s32.totalorder %s247, %s248
      %p257 = scmp.eq.s32.totalorder %s27, 0
      %p258 = por %p256, %p257
      %p259 = scmp.ne.s32.totalorder %s247, %s248
      %p260 = scmp.eq.s32.totalorder %s28, 1
      %p261 = por %p259, %p260
      %p263 = scmp.ne.s32.totalorder %s248, %s262
      %p264 = scmp.eq.s32.totalorder %s28, 0
      %p265 = por %p263, %p264
      %s266 = ssub.s32 %s22, %s29
      %p267 = scmp.eq.s32.totalorder %s266, 0
      %s269 = sadd.s32 %s268, 1
      %s270 = scalar_select %p267, %s268, %s269
      %p273 = pneg %p267
      %p274 = scmp.eq.s32.totalorder %s22, 1
      %p275 = por %p273, %p274
      %p276 = scmp.ne.s32.totalorder %s268, %s271
      %p277 = scmp.eq.s32.totalorder %s22, 0
      %p278 = por %p276, %p277
      %p279 = scmp.ne.s32.totalorder %s268, %s271
      %p280 = scmp.eq.s32.totalorder %s27, 1
      %p281 = por %p279, %p280
      %p282 = scmp.ne.s32.totalorder %s271, %s272
      %p283 = scmp.eq.s32.totalorder %s27, 0
      %p284 = por %p282, %p283
      %p285 = scmp.ne.s32.totalorder %s271, %s272
      %p286 = scmp.eq.s32.totalorder %s28, 1
      %p287 = por %p285, %p286
      %p289 = scmp.ne.s32.totalorder %s272, %s288
      %p290 = scmp.eq.s32.totalorder %s28, 0
      %p291 = por %p289, %p290
      %p292 = scmp.le.s32.totalorder 1, %s22
      %p293 = scmp.lt.s32.totalorder %s22, 3
      %p294 = pnand %p292, %p293
      %p295 = pneg %p294
      // Predicated region
      $region9: #{_fcnn_forward_jit.1} parent=5 // pred_check
        _
      $region10: #{_fcnn_forward_jit.1} parent=5 // pred_check_branch
        %297 = sbr.rel (%p294) target = $region12
      $region11: #{_fcnn_forward_jit.1} parent=5 // pred_region
        %s298 = ssub.s32 %s22, 1
        // Predicated region
        $region13: #{_fcnn_forward_jit.1} parent=11 // pred_check
          %p299 = pneg %p69
        $region14: #{_fcnn_forward_jit.1} parent=11 // pred_check_branch
          %301 = sbr.rel (%p299) target = $region16
        $region15: #{_fcnn_forward_jit.1} parent=11 // pred_region
          _
        $region16: #{_fcnn_forward_jit.1} parent=11 // pred_fallthru
          _
        // Predicated region
        $region17: #{_fcnn_forward_jit.1} parent=11 // pred_check
          %p302 = pneg %p90
        $region18: #{_fcnn_forward_jit.1} parent=11 // pred_check_branch
          %304 = sbr.rel (%p302) target = $region20
        $region19: #{_fcnn_forward_jit.1} parent=11 // pred_region
          _
        $region20: #{_fcnn_forward_jit.1} parent=11 // pred_fallthru
          _
        // Predicated region
        $region21: #{_fcnn_forward_jit.1} parent=11 // pred_check
          %p305 = pneg %p111
        $region22: #{_fcnn_forward_jit.1} parent=11 // pred_check_branch
          %307 = sbr.rel (%p305) target = $region24
        $region23: #{_fcnn_forward_jit.1} parent=11 // pred_region
          _
        $region24: #{_fcnn_forward_jit.1} parent=11 // pred_fallthru
          _
        // Predicated region
        $region25: #{_fcnn_forward_jit.1} parent=11 // pred_check
          %p308 = pneg %p132
        $region26: #{_fcnn_forward_jit.1} parent=11 // pred_check_branch
          %310 = sbr.rel (%p308) target = $region28
        $region27: #{_fcnn_forward_jit.1} parent=11 // pred_region
          _
        $region28: #{_fcnn_forward_jit.1} parent=11 // pred_fallthru
          _
        // Predicated region
        $region29: #{_fcnn_forward_jit.1} parent=11 // pred_check
          %p311 = pneg %p153
        $region30: #{_fcnn_forward_jit.1} parent=11 // pred_check_branch
          %313 = sbr.rel (%p311) target = $region32
        $region31: #{_fcnn_forward_jit.1} parent=11 // pred_region
          _
        $region32: #{_fcnn_forward_jit.1} parent=11 // pred_fallthru
          _
        // Predicated region
        $region33: #{_fcnn_forward_jit.1} parent=11 // pred_check
          %p314 = pneg %p174
        $region34: #{_fcnn_forward_jit.1} parent=11 // pred_check_branch
          %316 = sbr.rel (%p314) target = $region36
        $region35: #{_fcnn_forward_jit.1} parent=11 // pred_region
          _
        $region36: #{_fcnn_forward_jit.1} parent=11 // pred_fallthru
          _
        // Predicated region
        $region37: #{_fcnn_forward_jit.1} parent=11 // pred_check
          %p317 = pneg %p195
        $region38: #{_fcnn_forward_jit.1} parent=11 // pred_check_branch
          %319 = sbr.rel (%p317) target = $region40
        $region39: #{_fcnn_forward_jit.1} parent=11 // pred_region
          _
        $region40: #{_fcnn_forward_jit.1} parent=11 // pred_fallthru
          _
        // Predicated region
        $region41: #{_fcnn_forward_jit.1} parent=11 // pred_check
          %p320 = pneg %p216
        $region42: #{_fcnn_forward_jit.1} parent=11 // pred_check_branch
          %322 = sbr.rel (%p320) target = $region44
        $region43: #{_fcnn_forward_jit.1} parent=11 // pred_region
          _
        $region44: #{_fcnn_forward_jit.1} parent=11 // pred_fallthru
          _
        // Predicated region
        $region45: #{_fcnn_forward_jit.1} parent=11 // pred_check
          %p323 = pneg %p237
        $region46: #{_fcnn_forward_jit.1} parent=11 // pred_check_branch
          %325 = sbr.rel (%p323) target = $region48
        $region47: #{_fcnn_forward_jit.1} parent=11 // pred_region
          _
        $region48: #{_fcnn_forward_jit.1} parent=11 // pred_fallthru
          _
        // Predicated region
        $region49: #{_fcnn_forward_jit.1} parent=11 // pred_check
          %p326 = pneg %p258
        $region50: #{_fcnn_forward_jit.1} parent=11 // pred_check_branch
          %328 = sbr.rel (%p326) target = $region52
        $region51: #{_fcnn_forward_jit.1} parent=11 // pred_region
          _
        $region52: #{_fcnn_forward_jit.1} parent=11 // pred_fallthru
          _
      $region12: #{_fcnn_forward_jit.1} parent=5 // pred_fallthru
        _
      %p329 = scmp.lt.s32.totalorder %s22, 2
      // Predicated region
      $region53: #{_fcnn_forward_jit.1} parent=5 // pred_check
        %p330 = pneg %p329
      $region54: #{_fcnn_forward_jit.1} parent=5 // pred_check_branch
        %332 = sbr.rel (%p330) target = $region56
      $region55: #{_fcnn_forward_jit.1} parent=5 // pred_region
        // Predicated region
        $region57: #{_fcnn_forward_jit.1} parent=55 // pred_check
          %p333 = pneg %p42
        $region58: #{_fcnn_forward_jit.1} parent=55 // pred_check_branch
          %335 = sbr.rel (%p333) target = $region60
        $region59: #{_fcnn_forward_jit.1} parent=55 // pred_region
          %p336 = scmp.lt.s32.totalorder %s22, 1
          %s337 = scalar_select %p336, %s22, 1
          %s338 = smul.addr %s337, 4
          %s339 = scalar_lea.vmem %s0, %s338
        $region60: #{_fcnn_forward_jit.1} parent=55 // pred_fallthru
          _
      $region56: #{_fcnn_forward_jit.1} parent=5 // pred_fallthru
        _
      %p340 = scmp.le.s32.totalorder 1, %s22
      %p341 = scmp.lt.s32.totalorder %s22, 3
      %p342 = pnand %p340, %p341
      %p343 = pneg %p342
      // Predicated region
      $region61: #{_fcnn_forward_jit.1} parent=5 // pred_check
        _
      $region62: #{_fcnn_forward_jit.1} parent=5 // pred_check_branch
        %345 = sbr.rel (%p342) target = $region64
      $region63: #{_fcnn_forward_jit.1} parent=5 // pred_region
        %s346 = ssub.s32 %s22, 1
        %p347 = scmp.lt.s32.totalorder %s27, 1
        %s348 = scalar_select %p347, %s27, 1
        %s349 = smul.addr %s348, 4
        %s350 = scalar_lea.vmem %s0, %s349
        %p351 = pneg %p48
        %p352 = pneg %p45
        %p353 = pneg %p69
        %p354 = pneg %p66
        %p355 = pneg %p90
        %p356 = pneg %p87
        %p357 = pneg %p111
        %p358 = pneg %p108
        %p359 = pneg %p132
        %p360 = pneg %p129
        %p361 = pneg %p153
        %p362 = pneg %p150
        %p363 = pneg %p174
        %p364 = pneg %p171
        %p365 = pneg %p195
        %p366 = pneg %p192
        %p367 = pneg %p216
        %p368 = pneg %p213
        %p369 = pneg %p237
        %p370 = pneg %p234
        %p371 = pneg %p258
        %p372 = pneg %p255
        %p373 = pneg %p284
        %p374 = pneg %p281
        %s375 = sand.u32 %s271, 1
        %s376 = scalar_lea.sflag [#allocation4], %s375
        %s377 = sand.u32 %s271, 1
        %s378 = scalar_lea.vmem [#allocation3], %s377
        %p379 = scmp.lt.s32.totalorder %s27, 1
        %s380 = scalar_select %p379, %s27, 1
        %s381 = smul.addr %s380, 4
        %s382 = scalar_lea.vmem %s0, %s381
        %v383 = vld [vmem:[%s382] sm:$0xf]
        %v384 = vld [vmem:[%s1] sm:$0xff]
        %v385 = vld [vmem:[%s1 + $0x8] sm:$0xff]
        %v386 = vld [vmem:[%s1 + $0x10] sm:$0xff]
        %v387 = vld [vmem:[%s1 + $0x18] sm:$0xff]
        %v388 = vld [vmem:[%s1 + $0x20] sm:$0xff]
        %v389 = vld [vmem:[%s1 + $0x28] sm:$0xff]
        %v390 = vld [vmem:[%s1 + $0x30] sm:$0xff]
        %v391 = vld [vmem:[%s1 + $0x38] sm:$0xff]
        %v392 = vld [vmem:[%s2] sm:$0xff]
        %v393 = vld [vmem:[%s2 + $0x8] sm:$0xff]
        %v394 = vld [vmem:[%s2 + $0x10] sm:$0xff]
        %v395 = vld [vmem:[%s2 + $0x18] sm:$0xff]
        %v396 = vld [vmem:[%s2 + $0x20] sm:$0xff]
        %v397 = vld [vmem:[%s2 + $0x28] sm:$0xff]
        %v398 = vld [vmem:[%s2 + $0x30] sm:$0xff]
        %v399 = vld [vmem:[%s2 + $0x38] sm:$0xff]
        %401 = vset.pattern.permute.xlu0 0
        %402 = vperm.xlu0 %401, %v392
        %v403 = vpop.permute.xlu0 %402
        %406 = vset.pattern.permute.xlu0 0
        %407 = vperm.xlu0 %406, %v393
        %v408 = vpop.permute.xlu0 %407
        %411 = vset.pattern.permute.xlu0 0
        %412 = vperm.xlu0 %411, %v394
        %v413 = vpop.permute.xlu0 %412
        %416 = vset.pattern.permute.xlu0 0
        %417 = vperm.xlu0 %416, %v395
        %v418 = vpop.permute.xlu0 %417
        %421 = vset.pattern.permute.xlu0 0
        %422 = vperm.xlu0 %421, %v396
        %v423 = vpop.permute.xlu0 %422
        %426 = vset.pattern.permute.xlu0 0
        %427 = vperm.xlu0 %426, %v397
        %v428 = vpop.permute.xlu0 %427
        %431 = vset.pattern.permute.xlu0 0
        %432 = vperm.xlu0 %431, %v398
        %v433 = vpop.permute.xlu0 %432
        %436 = vset.pattern.permute.xlu0 0
        %437 = vperm.xlu0 %436, %v399
        %v438 = vpop.permute.xlu0 %437
        %vm440 = vcmask 31744
        %v442 = vsel %vm440, %v384, 0
        %v445 = vsel %vm440, %v385, 0
        %v448 = vsel %vm440, %v386, 0
        %v451 = vsel %vm440, %v387, 0
        %v454 = vsel %vm440, %v388, 0
        %v457 = vsel %vm440, %v389, 0
        %v460 = vsel %vm440, %v390, 0
        %v463 = vsel %vm440, %v391, 0
        %vm465 = vcmask 1043456
        %v467 = vsel %vm465, %v383, 0
        %469 = vmatpush.msra.mxu0 0.0
        %470 = vmatpush.msra.mxu0 0.0
        %471 = vmatpush.msra.mxu0 0.0
        %472 = vmatpush.msra.mxu0 0.0
        %473 = vmatpush.msra.mxu0 0.0
        %474 = vmatpush.msra.mxu0 0.0
        %475 = vmatpush.msra.mxu0 0.0
        %476 = vmatpush.msra.mxu0 0.0
        %477 = vmatpush.msra.mxu0 0.0
        %478 = vmatpush.msra.mxu0 0.0
        %479 = vmatpush.msra.mxu0 0.0
        %480 = vmatpush.msra.mxu0 0.0
        %481 = vmatpush.msra.mxu0 0.0
        %482 = vmatpush.msra.mxu0 0.0
        %483 = vmatpush.msra.mxu0 0.0
        %484 = vmatpush.msra.mxu0 %v467
        %485 = vmatmul.f32.gmra.mxu0 %v442
        %v486 = vpop.f32.mrf.mxu0
        %v487 = vadd.f32 %v403, %v486
        %488 = vmatmul.f32.gmra.mxu0 %v445
        %v489 = vpop.f32.mrf.mxu0
        %v490 = vadd.f32 %v408, %v489
        %491 = vmatmul.f32.gmra.mxu0 %v448
        %v492 = vpop.f32.mrf.mxu0
        %v493 = vadd.f32 %v413, %v492
        %494 = vmatmul.f32.gmra.mxu0 %v451
        %v495 = vpop.f32.mrf.mxu0
        %v496 = vadd.f32 %v418, %v495
        %497 = vmatmul.f32.gmra.mxu0 %v454
        %v498 = vpop.f32.mrf.mxu0
        %v499 = vadd.f32 %v423, %v498
        %500 = vmatmul.f32.gmra.mxu0 %v457
        %v501 = vpop.f32.mrf.mxu0
        %v502 = vadd.f32 %v428, %v501
        %503 = vmatmul.f32.gmra.mxu0 %v460
        %v504 = vpop.f32.mrf.mxu0
        %v505 = vadd.f32 %v433, %v504
        %506 = vmatmul.f32.gmra.mxu0 %v463
        %v507 = vpop.f32.mrf.mxu0
        %v508 = vadd.f32 %v438, %v507
        %509 = vdwg.mxu0
        %v510 = vtanh.pop %v487
        %v511 = vtanh.pop %v490
        %v512 = vtanh.pop %v493
        %v513 = vtanh.pop %v496
        %v514 = vtanh.pop %v499
        %v515 = vtanh.pop %v502
        %v516 = vtanh.pop %v505
        %v517 = vtanh.pop %v508
        %v518 = vld [vmem:[%s3] sm:$0xff]
        %v519 = vld [vmem:[%s3 + $0x8] sm:$0xff]
        %v520 = vld [vmem:[%s3 + $0x10] sm:$0xff]
        %v521 = vld [vmem:[%s3 + $0x18] sm:$0xff]
        %v522 = vld [vmem:[%s3 + $0x20] sm:$0xff]
        %v523 = vld [vmem:[%s3 + $0x28] sm:$0xff]
        %v524 = vld [vmem:[%s3 + $0x30] sm:$0xff]
        %v525 = vld [vmem:[%s3 + $0x38] sm:$0xff]
        %v526 = vld [vmem:[%s4] sm:$0xff]
        %v527 = vld [vmem:[%s4 + $0x8] sm:$0xff]
        %v528 = vld [vmem:[%s4 + $0x10] sm:$0xff]
        %v529 = vld [vmem:[%s4 + $0x18] sm:$0xff]
        %v530 = vld [vmem:[%s4 + $0x20] sm:$0xff]
        %v531 = vld [vmem:[%s4 + $0x28] sm:$0xff]
        %v532 = vld [vmem:[%s4 + $0x30] sm:$0xff]
        %v533 = vld [vmem:[%s4 + $0x38] sm:$0xff]
        %535 = vset.pattern.permute.xlu0 0
        %536 = vperm.xlu0 %535, %v526
        %v537 = vpop.permute.xlu0 %536
        %540 = vset.pattern.permute.xlu0 0
        %541 = vperm.xlu0 %540, %v527
        %v542 = vpop.permute.xlu0 %541
        %545 = vset.pattern.permute.xlu0 0
        %546 = vperm.xlu0 %545, %v528
        %v547 = vpop.permute.xlu0 %546
        %550 = vset.pattern.permute.xlu0 0
        %551 = vperm.xlu0 %550, %v529
        %v552 = vpop.permute.xlu0 %551
        %555 = vset.pattern.permute.xlu0 0
        %556 = vperm.xlu0 %555, %v530
        %v557 = vpop.permute.xlu0 %556
        %560 = vset.pattern.permute.xlu0 0
        %561 = vperm.xlu0 %560, %v531
        %v562 = vpop.permute.xlu0 %561
        %565 = vset.pattern.permute.xlu0 0
        %566 = vperm.xlu0 %565, %v532
        %v567 = vpop.permute.xlu0 %566
        %570 = vset.pattern.permute.xlu0 0
        %571 = vperm.xlu0 %570, %v533
        %v572 = vpop.permute.xlu0 %571
        %vm574 = vcmask 523264
        %v576 = vsel %vm574, %v518, 0
        %v579 = vsel %vm574, %v519, 0
        %v582 = vsel %vm574, %v520, 0
        %v585 = vsel %vm574, %v521, 0
        %v588 = vsel %vm574, %v522, 0
        %v591 = vsel %vm574, %v523, 0
        %v594 = vsel %vm574, %v524, 0
        %v597 = vsel %vm574, %v525, 0
        %599 = vmatpush.msra.mxu0 0.0
        %600 = vmatpush.msra.mxu0 0.0
        %601 = vmatpush.msra.mxu0 0.0
        %602 = vmatpush.msra.mxu0 0.0
        %603 = vmatpush.msra.mxu0 0.0
        %604 = vmatpush.msra.mxu0 0.0
        %605 = vmatpush.msra.mxu0 0.0
        %606 = vmatpush.msra.mxu0 0.0
        %607 = vmatpush.msra.mxu0 %v517
        %608 = vmatpush.msra.mxu0 %v516
        %609 = vmatpush.msra.mxu0 %v515
        %610 = vmatpush.msra.mxu0 %v514
        %611 = vmatpush.msra.mxu0 %v513
        %612 = vmatpush.msra.mxu0 %v512
        %613 = vmatpush.msra.mxu0 %v511
        %614 = vmatpush.msra.mxu0 %v510
        %615 = vmatmul.f32.gmra.mxu0 %v576
        %v616 = vpop.f32.mrf.mxu0
        %v617 = vadd.f32 %v537, %v616
        %618 = vmatmul.f32.gmra.mxu0 %v579
        %v619 = vpop.f32.mrf.mxu0
        %v620 = vadd.f32 %v542, %v619
        %621 = vmatmul.f32.gmra.mxu0 %v582
        %v622 = vpop.f32.mrf.mxu0
        %v623 = vadd.f32 %v547, %v622
        %624 = vmatmul.f32.gmra.mxu0 %v585
        %v625 = vpop.f32.mrf.mxu0
        %v626 = vadd.f32 %v552, %v625
        %627 = vmatmul.f32.gmra.mxu0 %v588
        %v628 = vpop.f32.mrf.mxu0
        %v629 = vadd.f32 %v557, %v628
        %630 = vmatmul.f32.gmra.mxu0 %v591
        %v631 = vpop.f32.mrf.mxu0
        %v632 = vadd.f32 %v562, %v631
        %633 = vmatmul.f32.gmra.mxu0 %v594
        %v634 = vpop.f32.mrf.mxu0
        %v635 = vadd.f32 %v567, %v634
        %636 = vmatmul.f32.gmra.mxu0 %v597
        %v637 = vpop.f32.mrf.mxu0
        %v638 = vadd.f32 %v572, %v637
        %639 = vdwg.mxu0
        %v640 = vtanh.pop %v617
        %v641 = vtanh.pop %v620
        %v642 = vtanh.pop %v623
        %v643 = vtanh.pop %v626
        %v644 = vtanh.pop %v629
        %v645 = vtanh.pop %v632
        %v646 = vtanh.pop %v635
        %v647 = vtanh.pop %v638
        %v648 = vld [vmem:[%s5] sm:$0xff]
        %v649 = vld [vmem:[%s5 + $0x8] sm:$0xff]
        %v650 = vld [vmem:[%s5 + $0x10] sm:$0xff]
        %v651 = vld [vmem:[%s5 + $0x18] sm:$0xff]
        %v652 = vld [vmem:[%s5 + $0x20] sm:$0xff]
        %v653 = vld [vmem:[%s5 + $0x28] sm:$0xff]
        %v654 = vld [vmem:[%s5 + $0x30] sm:$0xff]
        %v655 = vld [vmem:[%s5 + $0x38] sm:$0xff]
        %v656 = vld [vmem:[%s6] sm:$0xff]
        %v657 = vld [vmem:[%s6 + $0x8] sm:$0xff]
        %v658 = vld [vmem:[%s6 + $0x10] sm:$0xff]
        %v659 = vld [vmem:[%s6 + $0x18] sm:$0xff]
        %v660 = vld [vmem:[%s6 + $0x20] sm:$0xff]
        %v661 = vld [vmem:[%s6 + $0x28] sm:$0xff]
        %v662 = vld [vmem:[%s6 + $0x30] sm:$0xff]
        %v663 = vld [vmem:[%s6 + $0x38] sm:$0xff]
        %665 = vset.pattern.permute.xlu0 0
        %666 = vperm.xlu0 %665, %v656
        %v667 = vpop.permute.xlu0 %666
        %670 = vset.pattern.permute.xlu0 0
        %671 = vperm.xlu0 %670, %v657
        %v672 = vpop.permute.xlu0 %671
        %675 = vset.pattern.permute.xlu0 0
        %676 = vperm.xlu0 %675, %v658
        %v677 = vpop.permute.xlu0 %676
        %680 = vset.pattern.permute.xlu0 0
        %681 = vperm.xlu0 %680, %v659
        %v682 = vpop.permute.xlu0 %681
        %685 = vset.pattern.permute.xlu0 0
        %686 = vperm.xlu0 %685, %v660
        %v687 = vpop.permute.xlu0 %686
        %690 = vset.pattern.permute.xlu0 0
        %691 = vperm.xlu0 %690, %v661
        %v692 = vpop.permute.xlu0 %691
        %695 = vset.pattern.permute.xlu0 0
        %696 = vperm.xlu0 %695, %v662
        %v697 = vpop.permute.xlu0 %696
        %700 = vset.pattern.permute.xlu0 0
        %701 = vperm.xlu0 %700, %v663
        %v702 = vpop.permute.xlu0 %701
        %v705 = vsel %vm574, %v648, 0
        %v708 = vsel %vm574, %v649, 0
        %v711 = vsel %vm574, %v650, 0
        %v714 = vsel %vm574, %v651, 0
        %v717 = vsel %vm574, %v652, 0
        %v720 = vsel %vm574, %v653, 0
        %v723 = vsel %vm574, %v654, 0
        %v726 = vsel %vm574, %v655, 0
        %728 = vmatpush.msra.mxu0 0.0
        %729 = vmatpush.msra.mxu0 0.0
        %730 = vmatpush.msra.mxu0 0.0
        %731 = vmatpush.msra.mxu0 0.0
        %732 = vmatpush.msra.mxu0 0.0
        %733 = vmatpush.msra.mxu0 0.0
        %734 = vmatpush.msra.mxu0 0.0
        %735 = vmatpush.msra.mxu0 0.0
        %736 = vmatpush.msra.mxu0 %v647
        %737 = vmatpush.msra.mxu0 %v646
        %738 = vmatpush.msra.mxu0 %v645
        %739 = vmatpush.msra.mxu0 %v644
        %740 = vmatpush.msra.mxu0 %v643
        %741 = vmatpush.msra.mxu0 %v642
        %742 = vmatpush.msra.mxu0 %v641
        %743 = vmatpush.msra.mxu0 %v640
        %744 = vmatmul.f32.gmra.mxu0 %v705
        %v745 = vpop.f32.mrf.mxu0
        %v746 = vadd.f32 %v667, %v745
        %747 = vmatmul.f32.gmra.mxu0 %v708
        %v748 = vpop.f32.mrf.mxu0
        %v749 = vadd.f32 %v672, %v748
        %750 = vmatmul.f32.gmra.mxu0 %v711
        %v751 = vpop.f32.mrf.mxu0
        %v752 = vadd.f32 %v677, %v751
        %753 = vmatmul.f32.gmra.mxu0 %v714
        %v754 = vpop.f32.mrf.mxu0
        %v755 = vadd.f32 %v682, %v754
        %756 = vmatmul.f32.gmra.mxu0 %v717
        %v757 = vpop.f32.mrf.mxu0
        %v758 = vadd.f32 %v687, %v757
        %759 = vmatmul.f32.gmra.mxu0 %v720
        %v760 = vpop.f32.mrf.mxu0
        %v761 = vadd.f32 %v692, %v760
        %762 = vmatmul.f32.gmra.mxu0 %v723
        %v763 = vpop.f32.mrf.mxu0
        %v764 = vadd.f32 %v697, %v763
        %765 = vmatmul.f32.gmra.mxu0 %v726
        %v766 = vpop.f32.mrf.mxu0
        %v767 = vadd.f32 %v702, %v766
        %768 = vdwg.mxu0
        %v769 = vtanh.pop %v746
        %v770 = vtanh.pop %v749
        %v771 = vtanh.pop %v752
        %v772 = vtanh.pop %v755
        %v773 = vtanh.pop %v758
        %v774 = vtanh.pop %v761
        %v775 = vtanh.pop %v764
        %v776 = vtanh.pop %v767
        %v777 = vld [vmem:[%s7] sm:$0xff]
        %v778 = vld [vmem:[%s7 + $0x8] sm:$0xff]
        %v779 = vld [vmem:[%s7 + $0x10] sm:$0xff]
        %v780 = vld [vmem:[%s7 + $0x18] sm:$0xff]
        %v781 = vld [vmem:[%s7 + $0x20] sm:$0xff]
        %v782 = vld [vmem:[%s7 + $0x28] sm:$0xff]
        %v783 = vld [vmem:[%s7 + $0x30] sm:$0xff]
        %v784 = vld [vmem:[%s7 + $0x38] sm:$0xff]
        %v785 = vld [vmem:[%s8] sm:$0xff]
        %v786 = vld [vmem:[%s8 + $0x8] sm:$0xff]
        %v787 = vld [vmem:[%s8 + $0x10] sm:$0xff]
        %v788 = vld [vmem:[%s8 + $0x18] sm:$0xff]
        %v789 = vld [vmem:[%s8 + $0x20] sm:$0xff]
        %v790 = vld [vmem:[%s8 + $0x28] sm:$0xff]
        %v791 = vld [vmem:[%s8 + $0x30] sm:$0xff]
        %v792 = vld [vmem:[%s8 + $0x38] sm:$0xff]
        %794 = vset.pattern.permute.xlu0 0
        %795 = vperm.xlu0 %794, %v785
        %v796 = vpop.permute.xlu0 %795
        %799 = vset.pattern.permute.xlu0 0
        %800 = vperm.xlu0 %799, %v786
        %v801 = vpop.permute.xlu0 %800
        %804 = vset.pattern.permute.xlu0 0
        %805 = vperm.xlu0 %804, %v787
        %v806 = vpop.permute.xlu0 %805
        %809 = vset.pattern.permute.xlu0 0
        %810 = vperm.xlu0 %809, %v788
        %v811 = vpop.permute.xlu0 %810
        %814 = vset.pattern.permute.xlu0 0
        %815 = vperm.xlu0 %814, %v789
        %v816 = vpop.permute.xlu0 %815
        %819 = vset.pattern.permute.xlu0 0
        %820 = vperm.xlu0 %819, %v790
        %v821 = vpop.permute.xlu0 %820
        %824 = vset.pattern.permute.xlu0 0
        %825 = vperm.xlu0 %824, %v791
        %v826 = vpop.permute.xlu0 %825
        %829 = vset.pattern.permute.xlu0 0
        %830 = vperm.xlu0 %829, %v792
        %v831 = vpop.permute.xlu0 %830
        %v834 = vsel %vm574, %v777, 0
        %v837 = vsel %vm574, %v778, 0
        %v840 = vsel %vm574, %v779, 0
        %v843 = vsel %vm574, %v780, 0
        %v846 = vsel %vm574, %v781, 0
        %v849 = vsel %vm574, %v782, 0
        %v852 = vsel %vm574, %v783, 0
        %v855 = vsel %vm574, %v784, 0
        %857 = vmatpush.msra.mxu0 0.0
        %858 = vmatpush.msra.mxu0 0.0
        %859 = vmatpush.msra.mxu0 0.0
        %860 = vmatpush.msra.mxu0 0.0
        %861 = vmatpush.msra.mxu0 0.0
        %862 = vmatpush.msra.mxu0 0.0
        %863 = vmatpush.msra.mxu0 0.0
        %864 = vmatpush.msra.mxu0 0.0
        %865 = vmatpush.msra.mxu0 %v776
        %866 = vmatpush.msra.mxu0 %v775
        %867 = vmatpush.msra.mxu0 %v774
        %868 = vmatpush.msra.mxu0 %v773
        %869 = vmatpush.msra.mxu0 %v772
        %870 = vmatpush.msra.mxu0 %v771
        %871 = vmatpush.msra.mxu0 %v770
        %872 = vmatpush.msra.mxu0 %v769
        %873 = vmatmul.f32.gmra.mxu0 %v834
        %v874 = vpop.f32.mrf.mxu0
        %v875 = vadd.f32 %v796, %v874
        %876 = vmatmul.f32.gmra.mxu0 %v837
        %v877 = vpop.f32.mrf.mxu0
        %v878 = vadd.f32 %v801, %v877
        %879 = vmatmul.f32.gmra.mxu0 %v840
        %v880 = vpop.f32.mrf.mxu0
        %v881 = vadd.f32 %v806, %v880
        %882 = vmatmul.f32.gmra.mxu0 %v843
        %v883 = vpop.f32.mrf.mxu0
        %v884 = vadd.f32 %v811, %v883
        %885 = vmatmul.f32.gmra.mxu0 %v846
        %v886 = vpop.f32.mrf.mxu0
        %v887 = vadd.f32 %v816, %v886
        %888 = vmatmul.f32.gmra.mxu0 %v849
        %v889 = vpop.f32.mrf.mxu0
        %v890 = vadd.f32 %v821, %v889
        %891 = vmatmul.f32.gmra.mxu0 %v852
        %v892 = vpop.f32.mrf.mxu0
        %v893 = vadd.f32 %v826, %v892
        %894 = vmatmul.f32.gmra.mxu0 %v855
        %v895 = vpop.f32.mrf.mxu0
        %v896 = vadd.f32 %v831, %v895
        %897 = vdwg.mxu0
        %v898 = vtanh.pop %v875
        %v899 = vtanh.pop %v878
        %v900 = vtanh.pop %v881
        %v901 = vtanh.pop %v884
        %v902 = vtanh.pop %v887
        %v903 = vtanh.pop %v890
        %v904 = vtanh.pop %v893
        %v905 = vtanh.pop %v896
        %v906 = vld [vmem:[%s9] sm:$0x1]
        %v907 = vld [vmem:[#allocation2] sm:$0x1]
        %909 = vset.pattern.permute.xlu0 0
        %910 = vperm.xlu0 %909, %v907
        %v911 = vpop.permute.xlu0 %910
        %v913 = vperm.slane %v911, 0
        %v915 = vsel %vm574, %v906, 0
        %917 = vmatpush.msra.mxu0 0.0
        %918 = vmatpush.msra.mxu0 0.0
        %919 = vmatpush.msra.mxu0 0.0
        %920 = vmatpush.msra.mxu0 0.0
        %921 = vmatpush.msra.mxu0 0.0
        %922 = vmatpush.msra.mxu0 0.0
        %923 = vmatpush.msra.mxu0 0.0
        %924 = vmatpush.msra.mxu0 0.0
        %925 = vmatpush.msra.mxu0 %v905
        %926 = vmatpush.msra.mxu0 %v904
        %927 = vmatpush.msra.mxu0 %v903
        %928 = vmatpush.msra.mxu0 %v902
        %929 = vmatpush.msra.mxu0 %v901
        %930 = vmatpush.msra.mxu0 %v900
        %931 = vmatpush.msra.mxu0 %v899
        %932 = vmatpush.msra.mxu0 %v898
        %933 = vmatmul.f32.gmra.mxu0 %v915
        %v934 = vpop.f32.mrf.mxu0
        %v935 = vadd.f32 %v913, %v934
        %936 = vdwg.mxu0
        %937 = vst [vmem:[%s378] sm:$0x1] %v935
        %s938 = sand.u32 %s271, 1
        %s939 = scalar_lea.sflag [#allocation4], %s938
        %s940 = sand.u32 %s271, 1
        %s941 = scalar_lea.vmem [#allocation3], %s940
        // Predicated region
        $region65: #{_fcnn_forward_jit.1} parent=63 // pred_check
          %p942 = pneg %p281
        $region66: #{_fcnn_forward_jit.1} parent=63 // pred_check_branch
          %944 = sbr.rel (%p942) target = $region68
        $region67: #{_fcnn_forward_jit.1} parent=63 // pred_region
          %946 = vsyncadd %s939, 0
          %s947 = scalar_lea.hbm %s11, %s27
          %s949 = sshll.u32 %s941, 4
          %s950 = int_to_ptr.vmem [resolvable:$true] %s949
          %s951 = sshll.u32 %s947, 4
          %s952 = int_to_ptr.hbm [resolvable:$true] %s951
          %954 = dma.vmem_to_hbm [thread:$0]  %s950, 16, %s952, %s939
        $region68: #{_fcnn_forward_jit.1} parent=63 // pred_fallthru
          _
      $region64: #{_fcnn_forward_jit.1} parent=5 // pred_fallthru
        _
      %p955 = scmp.le.s32.totalorder 2, %s22
      // Predicated region
      $region69: #{_fcnn_forward_jit.1} parent=5 // pred_check
        %p956 = pneg %p955
      $region70: #{_fcnn_forward_jit.1} parent=5 // pred_check_branch
        %958 = sbr.rel (%p956) target = $region72
      $region71: #{_fcnn_forward_jit.1} parent=5 // pred_region
        %s959 = ssub.s32 %s22, 2
        // Predicated region
        $region73: #{_fcnn_forward_jit.1} parent=71 // pred_check
          %p960 = pneg %p287
        $region74: #{_fcnn_forward_jit.1} parent=71 // pred_check_branch
          %962 = sbr.rel (%p960) target = $region76
        $region75: #{_fcnn_forward_jit.1} parent=71 // pred_region
          %s963 = sand.u32 %s272, 1
          %s964 = scalar_lea.sflag [#allocation4], %s963
          %s965 = sand.u32 %s272, 1
          %s966 = scalar_lea.vmem [#allocation3], %s965
          %968 = dma.done %s964, 16
        $region76: #{_fcnn_forward_jit.1} parent=71 // pred_fallthru
          _
      $region72: #{_fcnn_forward_jit.1} parent=5 // pred_fallthru
        _
    $region6: #{_fcnn_forward_jit.1} parent=1 // loop_footer
      %s26 = sadd.s32 1, %s22
    $region7: #{_fcnn_forward_jit.1} parent=1 // loop_footer_branch
      %21 = sbr.rel target = $region3
    $region8: #{_fcnn_forward_jit.1} parent=1 // loop_exit
      _
    %969 = vsyncpa [#allocation4], 1
    %s970 = scalar_lea.sflag [#allocation4], 1
    %971 = vsyncpa %s970, 1

</llo_original>
